<compile_context>
chip_gen: v5e
topology: v5e:2x2
jax: 0.10.0
libtpu: 0.0.40
codegen_flags: <defaults>
</compile_context>

<pallas_src>
import numpy as np
import jax
import jax.numpy as jnp
from jax.experimental import pallas as pl
from jax.experimental.pallas import tpu as pltpu

LANE = 128


# ----------------------------- Pallas kernel ------------------------------- #
def _causal_spec_conv_kernel(x_ref, a_ref, c_ref, out_ref):
    """Grid = (lane_tiles, mode_chunks); mode_chunks is the reduction axis.

    Per grid step:
      Y  = A_chunk(G*T, T) @ x(T, Nt)          -> (G*T, Nt)   one MXU matmul
      out(T, Nt) += sum_g c[g, 0, :] * Y[g]                    VPU reduce
    """
    k = pl.program_id(1)

    @pl.when(k == 0)
    def _():
        out_ref[...] = jnp.zeros_like(out_ref)

    T, nt = x_ref.shape
    g = a_ref.shape[0] // T

    y = jnp.dot(a_ref[...], x_ref[...], preferred_element_type=jnp.float32)
    y = y.reshape(g, T, nt)                       # (G, T, Nt), T % 8 == 0 aligned
    out_ref[...] += jnp.sum(y * c_ref[...], axis=0)


# ---------------------------- tiling heuristics ----------------------------- #
def _pick_col_tile(npad):
    for nt in (1024, 512, 256, 128):
        if npad % nt == 0:
            return nt
    return npad


def _pick_chunk(two_m, T, nt, budget_bytes=40 * 1024 * 1024):
    """Largest divisor of 2M whose working set fits a conservative VMEM budget."""
    fixed = 2 * T * nt * 2 + 2 * T * nt * 4            # x (bf16) + out (f32), 2x buffered
    best = None
    for g in range(1, two_m + 1):
        if two_m % g:
            continue
        if (g * T) % 8 and g != two_m:                  # keep A block sublane-aligned
            continue
        cost = (fixed
                + 2 * g * T * T * 2                     # A chunk, bf16, double-buffered
                + 2 * g * nt * 4                        # coefficients, f32, double-buffered
                + g * T * nt * 4)                       # f32 matmul result
        if cost <= budget_bytes:
            best = g
    return best if best is not None else two_m


# ------------------------------ kernel wrapper ------------------------------ #
def causal_spec_conv(x, A_flat, c_pad, T, n_modes):
    """x: (B, T, D) f32; A_flat: (2M*T, T) bf16; c_pad: (2M, 1, Npad) f32."""
    B, Tx, D = x.shape
    assert Tx == T
    two_m = 2 * n_modes
    N = B * D
    Npad = c_pad.shape[-1]
    Nt = _pick_col_tile(Npad)
    G = _pick_chunk(two_m, T, Nt)

    # Fold batch into the lane dim (A reused across batch, lane-dense output),
    # pad lanes to a multiple of 128, cast to bf16 for the MXU.
    xt = jnp.transpose(x, (1, 0, 2)).reshape(T, N)
    if Npad > N:
        xt = jnp.pad(xt, ((0, 0), (0, Npad - N)))
    xt = xt.astype(jnp.bfloat16)

    grid = (Npad // Nt, two_m // G)

    out_pad = pl.pallas_call(
        _causal_spec_conv_kernel,
        out_shape=jax.ShapeDtypeStruct((T, Npad), jnp.float32),
        grid_spec=pltpu.PrefetchScalarGridSpec(
            num_scalar_prefetch=0,
            grid=grid,
            in_specs=[
                pl.BlockSpec((T, Nt), lambda j, k: (0, j)),        # x (lane tile)
                pl.BlockSpec((G * T, T), lambda j, k: (k, 0)),     # stacked DFT rows
                pl.BlockSpec((G, 1, Nt), lambda j, k: (k, 0, j)),  # stacked coeffs
            ],
            out_specs=pl.BlockSpec((T, Nt), lambda j, k: (0, j)),
        ),
        compiler_params=pltpu.CompilerParams(
            dimension_semantics=("parallel", "arbitrary"),
            vmem_limit_bytes=64 * 1024 * 1024),
    )(xt, A_flat, c_pad)

    return out_pad[:, :N].reshape(T, B, D).transpose(1, 0, 2)


# --------------------- parameter / operand preparation --------------------- #
def precompute_kernel_operands(weights_c, idft_exps_c, n_modes, T, B, D):
    """Build stacked causal Toeplitz DFT matrix (bf16) and fused coefficients."""
    mode_idx = np.arange(n_modes, dtype=np.float64)
    t = np.arange(T, dtype=np.float64)
    lag = t[:, None] - t[None, :] + 1.0                      # (t - s + 1)
    mask = (t[:, None] >= t[None, :]).astype(np.float64)     # causal mask s <= t
    phase = 2.0 * np.pi * mode_idx[:, None, None] * lag[None, :, :] / T
    Ar = np.cos(phase) * mask                                # (M, T, T)
    Ai = np.sin(phase) * mask                                # (M, T, T)

    # c[m, d] = sum_n weights[m, n, d] * idft_exps[n]  (parameter-only fusion)
    c = np.einsum('mnd,n->md', weights_c, idft_exps_c)       # (M, D) complex
    # Stack real/imag (signs folded): out = sum_k c_cat[k] * (A_cat[k] @ x)
    A_cat = np.concatenate([Ar, Ai], axis=0)                 # (2M, T, T)
    c_cat = np.concatenate([np.real(c), -np.imag(c)], axis=0)  # (2M, D)

    # Broadcast coefficients over the folded batch-lane dim and pad to 128.
    N = B * D
    Npad = max(LANE, ((N + LANE - 1) // LANE) * LANE)
    c_bd = np.broadcast_to(c_cat[:, None, :], (2 * n_modes, B, D)).reshape(2 * n_modes, N)
    c_pad = np.zeros((2 * n_modes, 1, Npad), dtype=np.float32)
    c_pad[:, 0, :N] = c_bd

    A_flat = A_cat.reshape(2 * n_modes * T, T)
    return jnp.asarray(A_flat, jnp.bfloat16), jnp.asarray(c_pad, jnp.float32)


# ----------------------- numpy reference (torch port) ---------------------- #
def reference_forward_np(x, weights_c, idft_exps_c, n_modes, T):
    """Direct float64/complex128 port of CausalSpecConv.forward (prev_x=None)."""
    B, _, D = x.shape
    # get_dft_matrix
    time_idx = np.arange(1, T + 2, dtype=np.float64)
    mode_idx = np.arange(n_modes, dtype=np.float64)
    full_idx = np.outer(mode_idx, time_idx)
    W = np.exp(1j * 2 * np.pi * full_idx / T)
    W[:, -1] = W[:, -2]
    w = W.reshape(1, n_modes, 1, T + 1)

    prev_x = np.zeros_like(x)
    prev_x_ft = np.zeros((B, n_modes, D), dtype=np.complex128)
    x_cat = np.concatenate([prev_x, x], axis=-2)
    f = (-x_cat[:, :T, :] + x_cat[:, T:2 * T, :]).transpose(0, 2, 1)[:, None, :, :]
    f = np.broadcast_to(f, (B, n_modes, D, T))
    f = np.concatenate([prev_x_ft[..., None], f.astype(np.complex128)], axis=-1)

    n_fft = 2 * (T + 1) - 1
    F = np.fft.fft(f, n=n_fft, axis=-1)
    Wf = np.fft.fft(w, n=n_fft, axis=-1)
    conv = np.fft.ifft(F * Wf, n=n_fft, axis=-1)[..., 1:T + 1]
    x_stft = conv.transpose(0, 3, 1, 2)                       # (B, T, M, D)

    y = np.einsum('btmd,mnd->btnd', x_stft, weights_c)
    out = np.einsum('btmd,m->btd', y, idft_exps_c).real
    return out


# ----------------------------------- main ----------------------------------- #
if __name__ == "__main__":
    # small shapes consistent with the module: n_modes <= (T + 1) // 2
    B, T, M, D = 2, 16, 8, 32

    key = jax.random.PRNGKey(0)
    kx, kw1, kw2 = jax.random.split(key, 3)

    # input embedding (batch, T, hidden)
    x = jax.random.normal(kx, (B, T, D), dtype=jnp.float32)

    # deterministic synthetic parameters (module __init__ shapes):
    #   weights: complex (n_modes, n_modes, hidden), scale 1/n_modes
    wr = np.asarray(jax.random.normal(kw1, (M, M, D), dtype=jnp.float32)) / M
    wi = np.asarray(jax.random.normal(kw2, (M, M, D), dtype=jnp.float32)) / M
    weights_c = (wr + 1j * wi).astype(np.complex128)
    #   idft_exps: complex (n_modes,)  -- deterministic synthetic choice
    mode_idx = np.arange(M, dtype=np.float64)
    idft_scale = np.where(mode_idx == 0, 1.0, 2.0) / T
    idft_exps_c = idft_scale * np.exp(-1j * 2 * np.pi * mode_idx / T)

    A_flat, c_pad = precompute_kernel_operands(weights_c, idft_exps_c, M, T, B, D)

    out = causal_spec_conv(x, A_flat, c_pad, T, M)
    out = jax.block_until_ready(out)

    out_ref = reference_forward_np(np.asarray(x, np.float64), weights_c,
                                   idft_exps_c, M, T)
    # bf16 operands on the MXU (f32 accumulation): tolerance loosened accordingly.
    np.testing.assert_allclose(np.asarray(out), out_ref, rtol=2e-2, atol=2e-2)

    print("KERNEL_OK")
</pallas_src>

<mosaic_0001>
module attributes {stable_mosaic.version = 11 : i64} {
  func.func @_causal_spec_conv_kernel(%arg0: i32, %arg1: i32, %arg2: memref<16x128xbf16, #tpu.memory_space<vmem>>, %arg3: memref<256x16xbf16, #tpu.memory_space<vmem>>, %arg4: memref<16x1x128xf32, #tpu.memory_space<vmem>>, %arg5: memref<16x128xf32, #tpu.memory_space<vmem>>) attributes {dimension_semantics = [#tpu.dimension_semantics<parallel>, #tpu.dimension_semantics<arbitrary>], iteration_bounds = array<i64: 1, 1>, scalar_prefetch = 0 : i64, scratch_operands = 0 : i64, tpu.core_type = #tpu.core_type<tc>, window_params = [{transform_indices = @transform_0, window_bounds = array<i64: 16, 128>}, {transform_indices = @transform_1, window_bounds = array<i64: 256, 16>}, {transform_indices = @transform_2, window_bounds = array<i64: 16, 1, 128>}, {transform_indices = @transform_3, window_bounds = array<i64: 16, 128>}]} {
    %c0_i32 = arith.constant 0 : i32
    %0 = arith.cmpi eq, %arg1, %c0_i32 : i32
    %1 = arith.extui %0 : i1 to i32
    %c0_i32_0 = arith.constant 0 : i32
    %2 = arith.cmpi ne, %1, %c0_i32_0 : i32
    scf.if %2 {
      %cst_12 = arith.constant 0.000000e+00 : f32
      %14 = vector.broadcast %cst_12 : f32 to vector<16x128xf32>
      %c0_13 = arith.constant 0 : index
      %c0_14 = arith.constant 0 : index
      %15 = vector.load %arg5[%c0_13, %c0_14] : memref<16x128xf32, #tpu.memory_space<vmem>>, vector<16x128xf32>
      tpu.vector_store %arg5[%c0_13, %c0_14], %14 {strides = array<i32>} : memref<16x128xf32, #tpu.memory_space<vmem>>, vector<16x128xf32>,
    } else {
    }
    %c0 = arith.constant 0 : index
    %c0_1 = arith.constant 0 : index
    %3 = vector.load %arg3[%c0, %c0_1] : memref<256x16xbf16, #tpu.memory_space<vmem>>, vector<256x16xbf16>
    %c0_2 = arith.constant 0 : index
    %c0_3 = arith.constant 0 : index
    %4 = vector.load %arg2[%c0_2, %c0_3] : memref<16x128xbf16, #tpu.memory_space<vmem>>, vector<16x128xbf16>
    %cst = arith.constant dense<0.000000e+00> : vector<256x128xf32>
    %5 = tpu.matmul %3, %4, %cst {dimension_numbers = #tpu.dot_dimension_numbers<[1], [0], [0], [1], [0, 0, 1, 1], [], []>} : vector<256x16xbf16>, vector<16x128xbf16>, vector<256x128xf32> -> vector<256x128xf32>
    %6 = vector.shape_cast %5 : vector<256x128xf32> to vector<16x16x128xf32>
    %c0_4 = arith.constant 0 : index
    %c0_5 = arith.constant 0 : index
    %7 = vector.load %arg5[%c0_4, %c0_5] : memref<16x128xf32, #tpu.memory_space<vmem>>, vector<16x128xf32>
    %c0_6 = arith.constant 0 : index
    %c0_7 = arith.constant 0 : index
    %c0_8 = arith.constant 0 : index
    %8 = vector.load %arg4[%c0_6, %c0_7, %c0_8] : memref<16x1x128xf32, #tpu.memory_space<vmem>>, vector<16x1x128xf32>
    %9 = vector.broadcast %8 : vector<16x1x128xf32> to vector<16x16x128xf32>
    %10 = arith.mulf %6, %9 : vector<16x16x128xf32>
    %cst_9 = arith.constant dense<0.000000e+00> : vector<16x128xf32>
    %11 = vector.multi_reduction <add>, %10, %cst_9 [0] : vector<16x16x128xf32> to vector<16x128xf32>
    %12 = arith.addf %7, %11 : vector<16x128xf32>
    %c0_10 = arith.constant 0 : index
    %c0_11 = arith.constant 0 : index
    %13 = vector.load %arg5[%c0_10, %c0_11] : memref<16x128xf32, #tpu.memory_space<vmem>>, vector<16x128xf32>
    tpu.vector_store %arg5[%c0_10, %c0_11], %12 {strides = array<i32>} : memref<16x128xf32, #tpu.memory_space<vmem>>, vector<16x128xf32>,
    return
  }
  func.func @transform_0(%arg0: i32, %arg1: i32) -> (i32, i32) {
    %c0_i32 = arith.constant 0 : i32
    %c0_i32_0 = arith.constant 0 : i32
    return %c0_i32, %arg0 : i32, i32
  }
  func.func @transform_1(%arg0: i32, %arg1: i32) -> (i32, i32) {
    %c0_i32 = arith.constant 0 : i32
    %c0_i32_0 = arith.constant 0 : i32
    return %arg1, %c0_i32 : i32, i32
  }
  func.func @transform_2(%arg0: i32, %arg1: i32) -> (i32, i32, i32) {
    %c0_i32 = arith.constant 0 : i32
    %c0_i32_0 = arith.constant 0 : i32
    return %arg1, %c0_i32, %arg0 : i32, i32, i32
  }
  func.func @transform_3(%arg0: i32, %arg1: i32) -> (i32, i32) {
    %c0_i32 = arith.constant 0 : i32
    %c0_i32_0 = arith.constant 0 : i32
    return %c0_i32, %arg0 : i32, i32
  }
}

</mosaic_0001>

<llo_original>
// kernel: tpu_custom_call.1
$region0: #{tpu_custom_call.1}
  #allocation0 [shape = 'u32[]', space=smem, size = 0x4, offset = 0x4, fixed_abs, tag = 'smem constant byte address 0x4 - core index']
  #allocation1 [shape = 'u32[72,128]{1,0:T(1,128)}', space=vmem, size = 0x9000, scoped, tag = 'internal scratch']
  %s0 = inlined_call_operand.vmem [shape: bf16[16,128], index: 0, kind: input, shape index: {}]
  %s1 = inlined_call_operand.vmem [shape: bf16[256,16], index: 1, kind: input, shape index: {}]
  %s2 = inlined_call_operand.vmem [shape: f32[16,1,128], index: 2, kind: input, shape index: {}]
  %s3 = inlined_call_operand.hbm [shape: f32[16,128], index: 3, kind: output, shape index: {}]
  %s4 = sld [smem:[#allocation0]]
  $region26: #{tpu_custom_call.1} parent=0
    _
  %s6 = ssub.s32 1, %s4
  %s7 = scalar_select 0, %s6, %s4
  $region1: #{tpu_custom_call.1} parent=0
    #allocation2 [shape = 'u8[8192]{0}', space=vmem, size = 0x2000, scoped, tag = 'output window, operand 0, single buffered']
    #allocation3 [shape = 's32[1]{0}', space=sflag, size = 0x4, scoped, tag = 'scoped memory for tpu_custom_call.1']
    %8 = vsyncpa [#allocation3], 0
    // Predicated region
    $region2: #{tpu_custom_call.1} parent=1 // pred_check
      _
    $region3: #{tpu_custom_call.1} parent=1 // pred_check_branch
      %10 = sbr.rel (0) target = $region5
    $region4: #{tpu_custom_call.1} parent=1 // pred_region
      _
    $region5: #{tpu_custom_call.1} parent=1 // pred_fallthru
      _
    // Predicated region
    $region6: #{tpu_custom_call.1} parent=1 // pred_check
      _
    $region7: #{tpu_custom_call.1} parent=1 // pred_check_branch
      %12 = sbr.rel (0) target = $region9
    $region8: #{tpu_custom_call.1} parent=1 // pred_region
      _
    $region9: #{tpu_custom_call.1} parent=1 // pred_fallthru
      _
    // Predicated region
    $region10: #{tpu_custom_call.1} parent=1 // pred_check
      _
    $region11: #{tpu_custom_call.1} parent=1 // pred_check_branch
      %14 = sbr.rel (0) target = $region13
    $region12: #{tpu_custom_call.1} parent=1 // pred_region
      _
    $region13: #{tpu_custom_call.1} parent=1 // pred_fallthru
      _
    %p16 = scmp.eq.s32.totalorder 0, 0
    // Predicated region
    $region14: #{tpu_custom_call.1} parent=1 // pred_check
      %p17 = pneg %p16
    $region15: #{tpu_custom_call.1} parent=1 // pred_check_branch
      %19 = sbr.rel (%p17) target = $region17
    $region16: #{tpu_custom_call.1} parent=1 // pred_region
      %20 = vst [vmem:[#allocation2] sm:$0xff] 0.0
      %21 = vst [vmem:[#allocation2 + $0x8] sm:$0xff] 0.0
    $region17: #{tpu_custom_call.1} parent=1 // pred_fallthru
      _
    %v22 = vld [vmem:[%s1] sm:$0xf]
    %v23 = vld [vmem:[%s1 + $0x4] sm:$0xf]
    %v24 = vld [vmem:[%s1 + $0x8] sm:$0xf]
    %v25 = vld [vmem:[%s1 + $0xc] sm:$0xf]
    %v26 = vld [vmem:[%s1 + $0x10] sm:$0xf]
    %v27 = vld [vmem:[%s1 + $0x14] sm:$0xf]
    %v28 = vld [vmem:[%s1 + $0x18] sm:$0xf]
    %v29 = vld [vmem:[%s1 + $0x1c] sm:$0xf]
    %v30 = vld [vmem:[%s1 + $0x20] sm:$0xf]
    %v31 = vld [vmem:[%s1 + $0x24] sm:$0xf]
    %v32 = vld [vmem:[%s1 + $0x28] sm:$0xf]
    %v33 = vld [vmem:[%s1 + $0x2c] sm:$0xf]
    %v34 = vld [vmem:[%s1 + $0x30] sm:$0xf]
    %v35 = vld [vmem:[%s1 + $0x34] sm:$0xf]
    %v36 = vld [vmem:[%s1 + $0x38] sm:$0xf]
    %v37 = vld [vmem:[%s1 + $0x3c] sm:$0xf]
    %v38 = vld [vmem:[%s1 + $0x40] sm:$0xf]
    %v39 = vld [vmem:[%s1 + $0x44] sm:$0xf]
    %v40 = vld [vmem:[%s1 + $0x48] sm:$0xf]
    %v41 = vld [vmem:[%s1 + $0x4c] sm:$0xf]
    %v42 = vld [vmem:[%s1 + $0x50] sm:$0xf]
    %v43 = vld [vmem:[%s1 + $0x54] sm:$0xf]
    %v44 = vld [vmem:[%s1 + $0x58] sm:$0xf]
    %v45 = vld [vmem:[%s1 + $0x5c] sm:$0xf]
    %v46 = vld [vmem:[%s1 + $0x60] sm:$0xf]
    %v47 = vld [vmem:[%s1 + $0x64] sm:$0xf]
    %v48 = vld [vmem:[%s1 + $0x68] sm:$0xf]
    %v49 = vld [vmem:[%s1 + $0x6c] sm:$0xf]
    %v50 = vld [vmem:[%s1 + $0x70] sm:$0xf]
    %v51 = vld [vmem:[%s1 + $0x74] sm:$0xf]
    %v52 = vld [vmem:[%s1 + $0x78] sm:$0xf]
    %v53 = vld [vmem:[%s1 + $0x7c] sm:$0xf]
    %v54 = vld [vmem:[%s0] sm:$0xf]
    %v55 = vld [vmem:[%s0 + $0x4] sm:$0xf]
    %v88 = vunpack.c.l.b16 %v22
    %v89 = vunpack.c.l.b16 %v23
    %v90 = vunpack.c.l.b16 %v24
    %v91 = vunpack.c.l.b16 %v25
    %v92 = vunpack.c.l.b16 %v26
    %v93 = vunpack.c.l.b16 %v27
    %v94 = vunpack.c.l.b16 %v28
    %v95 = vunpack.c.l.b16 %v29
    %v96 = vunpack.c.l.b16 %v30
    %v97 = vunpack.c.l.b16 %v31
    %v98 = vunpack.c.l.b16 %v32
    %v99 = vunpack.c.l.b16 %v33
    %v100 = vunpack.c.l.b16 %v34
    %v101 = vunpack.c.l.b16 %v35
    %v102 = vunpack.c.l.b16 %v36
    %v103 = vunpack.c.l.b16 %v37
    %v104 = vunpack.c.l.b16 %v38
    %v105 = vunpack.c.l.b16 %v39
    %v106 = vunpack.c.l.b16 %v40
    %v107 = vunpack.c.l.b16 %v41
    %v108 = vunpack.c.l.b16 %v42
    %v109 = vunpack.c.l.b16 %v43
    %v110 = vunpack.c.l.b16 %v44
    %v111 = vunpack.c.l.b16 %v45
    %v112 = vunpack.c.l.b16 %v46
    %v113 = vunpack.c.l.b16 %v47
    %v114 = vunpack.c.l.b16 %v48
    %v115 = vunpack.c.l.b16 %v49
    %v116 = vunpack.c.l.b16 %v50
    %v117 = vunpack.c.l.b16 %v51
    %v118 = vunpack.c.l.b16 %v52
    %v119 = vunpack.c.l.b16 %v53
    %v120 = vpack.c.b16 %v89, %v88
    %v121 = vpack.c.b16 %v91, %v90
    %v122 = vpack.c.b16 %v93, %v92
    %v123 = vpack.c.b16 %v95, %v94
    %v124 = vpack.c.b16 %v97, %v96
    %v125 = vpack.c.b16 %v99, %v98
    %v126 = vpack.c.b16 %v101, %v100
    %v127 = vpack.c.b16 %v103, %v102
    %v128 = vpack.c.b16 %v105, %v104
    %v129 = vpack.c.b16 %v107, %v106
    %v130 = vpack.c.b16 %v109, %v108
    %v131 = vpack.c.b16 %v111, %v110
    %v132 = vpack.c.b16 %v113, %v112
    %v133 = vpack.c.b16 %v115, %v114
    %v134 = vpack.c.b16 %v117, %v116
    %v135 = vpack.c.b16 %v119, %v118
    %v138 = vunpack.c.l.b16 %v54
    %v139 = vunpack.c.l.b16 %v55
    %v140 = vpack.c.b16 %v139, %v138
    %vm142 = vcmask 130048
    %v144 = vsel %vm142, %v120, 0
    %v147 = vsel %vm142, %v121, 0
    %v150 = vsel %vm142, %v122, 0
    %v153 = vsel %vm142, %v123, 0
    %v156 = vsel %vm142, %v124, 0
    %v159 = vsel %vm142, %v125, 0
    %v162 = vsel %vm142, %v126, 0
    %v165 = vsel %vm142, %v127, 0
    %v168 = vsel %vm142, %v128, 0
    %v171 = vsel %vm142, %v129, 0
    %v174 = vsel %vm142, %v130, 0
    %v177 = vsel %vm142, %v131, 0
    %v180 = vsel %vm142, %v132, 0
    %v183 = vsel %vm142, %v133, 0
    %v186 = vsel %vm142, %v134, 0
    %v189 = vsel %vm142, %v135, 0
    %191 = vmatpush.bf16.msra.mxu0 0
    %192 = vmatpush.bf16.msra.mxu0 0
    %193 = vmatpush.bf16.msra.mxu0 0
    %194 = vmatpush.bf16.msra.mxu0 0
    %195 = vmatpush.bf16.msra.mxu0 0
    %196 = vmatpush.bf16.msra.mxu0 0
    %197 = vmatpush.bf16.msra.mxu0 0
    %198 = vmatpush.bf16.msra.mxu0 %v140
    %199 = vmatmul.bf16.gmra.mxu0 %v144
    %v200 = vpop.f32.mrf.mxu0
    %v201 = vadd.f32 0.0, %v200
    %v202 = vpop.f32.mrf.mxu0
    %v203 = vadd.f32 0.0, %v202
    %204 = vmatmul.bf16.gmra.mxu0 %v147
    %v205 = vpop.f32.mrf.mxu0
    %v206 = vadd.f32 0.0, %v205
    %v207 = vpop.f32.mrf.mxu0
    %v208 = vadd.f32 0.0, %v207
    %209 = vmatmul.bf16.gmra.mxu0 %v150
    %v210 = vpop.f32.mrf.mxu0
    %v211 = vadd.f32 0.0, %v210
    %v212 = vpop.f32.mrf.mxu0
    %v213 = vadd.f32 0.0, %v212
    %214 = vmatmul.bf16.gmra.mxu0 %v153
    %v215 = vpop.f32.mrf.mxu0
    %v216 = vadd.f32 0.0, %v215
    %v217 = vpop.f32.mrf.mxu0
    %v218 = vadd.f32 0.0, %v217
    %219 = vmatmul.bf16.gmra.mxu0 %v156
    %v220 = vpop.f32.mrf.mxu0
    %v221 = vadd.f32 0.0, %v220
    %v222 = vpop.f32.mrf.mxu0
    %v223 = vadd.f32 0.0, %v222
    %224 = vmatmul.bf16.gmra.mxu0 %v159
    %v225 = vpop.f32.mrf.mxu0
    %v226 = vadd.f32 0.0, %v225
    %v227 = vpop.f32.mrf.mxu0
    %v228 = vadd.f32 0.0, %v227
    %229 = vmatmul.bf16.gmra.mxu0 %v162
    %v230 = vpop.f32.mrf.mxu0
    %v231 = vadd.f32 0.0, %v230
    %v232 = vpop.f32.mrf.mxu0
    %v233 = vadd.f32 0.0, %v232
    %234 = vmatmul.bf16.gmra.mxu0 %v165
    %v235 = vpop.f32.mrf.mxu0
    %v236 = vadd.f32 0.0, %v235
    %v237 = vpop.f32.mrf.mxu0
    %v238 = vadd.f32 0.0, %v237
    %239 = vmatmul.bf16.gmra.mxu0 %v168
    %v240 = vpop.f32.mrf.mxu0
    %v241 = vadd.f32 0.0, %v240
    %v242 = vpop.f32.mrf.mxu0
    %v243 = vadd.f32 0.0, %v242
    %244 = vmatmul.bf16.gmra.mxu0 %v171
    %v245 = vpop.f32.mrf.mxu0
    %v246 = vadd.f32 0.0, %v245
    %v247 = vpop.f32.mrf.mxu0
    %v248 = vadd.f32 0.0, %v247
    %249 = vmatmul.bf16.gmra.mxu0 %v174
    %v250 = vpop.f32.mrf.mxu0
    %v251 = vadd.f32 0.0, %v250
    %v252 = vpop.f32.mrf.mxu0
    %v253 = vadd.f32 0.0, %v252
    %254 = vmatmul.bf16.gmra.mxu0 %v177
    %v255 = vpop.f32.mrf.mxu0
    %v256 = vadd.f32 0.0, %v255
    %v257 = vpop.f32.mrf.mxu0
    %v258 = vadd.f32 0.0, %v257
    %259 = vmatmul.bf16.gmra.mxu0 %v180
    %v260 = vpop.f32.mrf.mxu0
    %v261 = vadd.f32 0.0, %v260
    %v262 = vpop.f32.mrf.mxu0
    %v263 = vadd.f32 0.0, %v262
    %264 = vmatmul.bf16.gmra.mxu0 %v183
    %v265 = vpop.f32.mrf.mxu0
    %v266 = vadd.f32 0.0, %v265
    %v267 = vpop.f32.mrf.mxu0
    %v268 = vadd.f32 0.0, %v267
    %269 = vmatmul.bf16.gmra.mxu0 %v186
    %v270 = vpop.f32.mrf.mxu0
    %v271 = vadd.f32 0.0, %v270
    %v272 = vpop.f32.mrf.mxu0
    %v273 = vadd.f32 0.0, %v272
    %274 = vmatmul.bf16.gmra.mxu0 %v189
    %v275 = vpop.f32.mrf.mxu0
    %v276 = vadd.f32 0.0, %v275
    %v277 = vpop.f32.mrf.mxu0
    %v278 = vadd.f32 0.0, %v277
    %279 = vdwg.mxu0
    %v280 = vld [vmem:[#allocation2] sm:$0xff]
    %v281 = vld [vmem:[#allocation2 + $0x8] sm:$0xff]
    %v282 = vld [vmem:[%s2] sm:$0x1]
    %v283 = vld [vmem:[%s2 + $0x1] sm:$0x1]
    %v284 = vld [vmem:[%s2 + $0x2] sm:$0x1]
    %v285 = vld [vmem:[%s2 + $0x3] sm:$0x1]
    %v286 = vld [vmem:[%s2 + $0x4] sm:$0x1]
    %v287 = vld [vmem:[%s2 + $0x5] sm:$0x1]
    %v288 = vld [vmem:[%s2 + $0x6] sm:$0x1]
    %v289 = vld [vmem:[%s2 + $0x7] sm:$0x1]
    %v290 = vld [vmem:[%s2 + $0x8] sm:$0x1]
    %v291 = vld [vmem:[%s2 + $0x9] sm:$0x1]
    %v292 = vld [vmem:[%s2 + $0xa] sm:$0x1]
    %v293 = vld [vmem:[%s2 + $0xb] sm:$0x1]
    %v294 = vld [vmem:[%s2 + $0xc] sm:$0x1]
    %v295 = vld [vmem:[%s2 + $0xd] sm:$0x1]
    %v296 = vld [vmem:[%s2 + $0xe] sm:$0x1]
    %v297 = vld [vmem:[%s2 + $0xf] sm:$0x1]
    %v314 = vperm.slane %v282, 0
    %v315 = vperm.slane %v283, 0
    %v316 = vperm.slane %v284, 0
    %v317 = vperm.slane %v285, 0
    %v318 = vperm.slane %v286, 0
    %v319 = vperm.slane %v287, 0
    %v320 = vperm.slane %v288, 0
    %v321 = vperm.slane %v289, 0
    %v322 = vperm.slane %v290, 0
    %v323 = vperm.slane %v291, 0
    %v324 = vperm.slane %v292, 0
    %v325 = vperm.slane %v293, 0
    %v326 = vperm.slane %v294, 0
    %v327 = vperm.slane %v295, 0
    %v328 = vperm.slane %v296, 0
    %v329 = vperm.slane %v297, 0
    %v346 = vmul.f32 %v201, %v314
    %v347 = vmul.f32 %v203, %v314
    %v348 = vmul.f32 %v206, %v315
    %v349 = vmul.f32 %v208, %v315
    %v350 = vmul.f32 %v211, %v316
    %v351 = vmul.f32 %v213, %v316
    %v352 = vmul.f32 %v216, %v317
    %v353 = vmul.f32 %v218, %v317
    %v354 = vmul.f32 %v221, %v318
    %v355 = vmul.f32 %v223, %v318
    %v356 = vmul.f32 %v226, %v319
    %v357 = vmul.f32 %v228, %v319
    %v358 = vmul.f32 %v231, %v320
    %v359 = vmul.f32 %v233, %v320
    %v360 = vmul.f32 %v236, %v321
    %v361 = vmul.f32 %v238, %v321
    %v362 = vmul.f32 %v241, %v322
    %v363 = vmul.f32 %v243, %v322
    %v364 = vmul.f32 %v246, %v323
    %v365 = vmul.f32 %v248, %v323
    %v366 = vmul.f32 %v251, %v324
    %v367 = vmul.f32 %v253, %v324
    %v368 = vmul.f32 %v256, %v325
    %v369 = vmul.f32 %v258, %v325
    %v370 = vmul.f32 %v261, %v326
    %v371 = vmul.f32 %v263, %v326
    %v372 = vmul.f32 %v266, %v327
    %v373 = vmul.f32 %v268, %v327
    %v374 = vmul.f32 %v271, %v328
    %v375 = vmul.f32 %v273, %v328
    %v376 = vmul.f32 %v276, %v329
    %v377 = vmul.f32 %v278, %v329
    %v378 = vadd.f32 %v346, %v348
    %v379 = vadd.f32 %v378, %v350
    %v380 = vadd.f32 %v379, %v352
    %v381 = vadd.f32 %v380, %v354
    %v382 = vadd.f32 %v381, %v356
    %v383 = vadd.f32 %v382, %v358
    %v384 = vadd.f32 %v383, %v360
    %v385 = vadd.f32 %v384, %v362
    %v386 = vadd.f32 %v385, %v364
    %v387 = vadd.f32 %v386, %v366
    %v388 = vadd.f32 %v387, %v368
    %v389 = vadd.f32 %v388, %v370
    %v390 = vadd.f32 %v389, %v372
    %v391 = vadd.f32 %v390, %v374
    %v392 = vadd.f32 %v391, %v376
    %v393 = vadd.f32 %v347, %v349
    %v394 = vadd.f32 %v393, %v351
    %v395 = vadd.f32 %v394, %v353
    %v396 = vadd.f32 %v395, %v355
    %v397 = vadd.f32 %v396, %v357
    %v398 = vadd.f32 %v397, %v359
    %v399 = vadd.f32 %v398, %v361
    %v400 = vadd.f32 %v399, %v363
    %v401 = vadd.f32 %v400, %v365
    %v402 = vadd.f32 %v401, %v367
    %v403 = vadd.f32 %v402, %v369
    %v404 = vadd.f32 %v403, %v371
    %v405 = vadd.f32 %v404, %v373
    %v406 = vadd.f32 %v405, %v375
    %v407 = vadd.f32 %v406, %v377
    %v408 = vadd.f32 %v280, %v392
    %v409 = vadd.f32 %v281, %v407
    %410 = vst [vmem:[#allocation2] sm:$0xff] %v408
    %411 = vst [vmem:[#allocation2 + $0x8] sm:$0xff] %v409
    // Predicated region
    $region18: #{tpu_custom_call.1} parent=1 // pred_check
      _
    $region19: #{tpu_custom_call.1} parent=1 // pred_check_branch
      %413 = sbr.rel (0) target = $region21
    $region20: #{tpu_custom_call.1} parent=1 // pred_region
      %415 = vsyncadd [#allocation3], 0
      %s416 = sshll.u32 [#allocation2], 4
      %s417 = int_to_ptr.vmem [resolvable:$true] %s416
      %s418 = sshll.u32 %s3, 4
      %s419 = int_to_ptr.hbm [resolvable:$true] %s418
      %424 = dma.vmem_to_hbm [thread:$0]  %s417, 256, %s419, [#allocation3], 128, 128, 8
    $region21: #{tpu_custom_call.1} parent=1 // pred_fallthru
      _
    // Predicated region
    $region22: #{tpu_custom_call.1} parent=1 // pred_check
      _
    $region23: #{tpu_custom_call.1} parent=1 // pred_check_branch
      %426 = sbr.rel (0) target = $region25
    $region24: #{tpu_custom_call.1} parent=1 // pred_region
      %428 = dma.done [#allocation3], 256
    $region25: #{tpu_custom_call.1} parent=1 // pred_fallthru
      _
    %429 = vsyncpa [#allocation3], 1

</llo_original>
